<compile_context>
chip_gen: v5e
topology: v5e:2x2
jax: 0.10.0
libtpu: 0.0.40
codegen_flags: <defaults>
</compile_context>

<pallas_src>
import jax
import jax.numpy as jnp
from jax.experimental import pallas as pl
from jax.experimental.pallas import tpu as pltpu


def _conv3x3_banded(a_bf16, shift_down, shift_up, wband_ref):
    """3x3 'same' conv in lane-folded (H, L) layout, L = BB*W*C.

    a_bf16     : (H, L)       bf16 activation (unpadded)
    shift_down : (H, H)       f32  (S @ y)[h] = y[h-1], zero for h == 0
    shift_up   : (H, H)       f32  (S @ y)[h] = y[h+1], zero for h == H-1
    wband_ref  : (3, L, L)    bf16 banded weights, one per kernel row
    returns    : (H, L)       f32
    """
    f32 = jnp.float32
    # One dense matmul per kernel row (W taps + W padding + batch fold live in band).
    y_top = jnp.dot(a_bf16, wband_ref[0], preferred_element_type=f32)
    y_mid = jnp.dot(a_bf16, wband_ref[1], preferred_element_type=f32)
    y_bot = jnp.dot(a_bf16, wband_ref[2], preferred_element_type=f32)
    # out[h] = y_top[h-1] + y_mid[h] + y_bot[h+1]; rows outside the image are zero.
    acc = y_mid
    acc = acc + jnp.dot(shift_down, y_top, preferred_element_type=f32)
    acc = acc + jnp.dot(shift_up, y_bot, preferred_element_type=f32)
    return acc


def basic_block_kernel(x_ref, w1_ref, w2_ref, shifts_ref, bn_ref, out_ref):
    """One grid step == BB batch images folded into the lane axis.

    x_ref      : (H, L)     f32   unpadded input (also the residual)
    w1_ref     : (3, L, L)  bf16  banded conv1 weights (block-diag over BB)
    w2_ref     : (3, L, L)  bf16  banded conv2 weights
    shifts_ref : (2, H, H)  f32   row-shift matrices [down (eye k=-1), up (eye k=+1)]
    bn_ref     : (4, L)     f32   [scale1, shift1, scale2, shift2], lane-tiled
    out_ref    : (H, L)     f32
    """
    x = x_ref[...]                                  # (H, L) f32
    x_bf = x.astype(jnp.bfloat16)
    bn = bn_ref[...]
    s_down = shifts_ref[0]
    s_up = shifts_ref[1]

    # conv1 -> BN1 -> ReLU   (f32 accumulate + f32 epilogue)
    h1 = _conv3x3_banded(x_bf, s_down, s_up, w1_ref)
    h1 = jnp.maximum(h1 * bn[0:1, :] + bn[1:2, :], 0.0)

    # conv2 -> BN2 -> +identity -> ReLU
    h2 = _conv3x3_banded(h1.astype(jnp.bfloat16), s_down, s_up, w2_ref)
    h2 = h2 * bn[2:3, :] + bn[3:4, :] + x           # residual (requires Cin == Cout)
    out_ref[...] = jnp.maximum(h2, 0.0)


def _conv_weights_to_banded(w_hwio, width):
    """(3, 3, Cin, Cout) HWIO -> (3, width*Cin, width*Cout) banded matrices.

    banded[kh, wi*Cin+ci, wo*Cout+co] = w_hwio[kh, wi-wo+1, ci, co] if 0<=wi-wo+1<3
                                        else 0
    i.e. the 1-D conv across W (with zero padding) for kernel row kh, expressed as a
    dense matmul in the lane-folded layout.
    """
    kh, kw, cin, cout = w_hwio.shape
    wi = jnp.arange(width)[:, None]                 # input column
    wo = jnp.arange(width)[None, :]                 # output column
    dx = wi - wo + (kw // 2)                        # kernel-column index
    valid = ((dx >= 0) & (dx < kw)).astype(w_hwio.dtype)
    dx_c = jnp.clip(dx, 0, kw - 1)
    taps = w_hwio[:, dx_c, :, :]                    # (kh, width, width, cin, cout)
    taps = taps * valid[None, :, :, None, None]
    banded = jnp.transpose(taps, (0, 1, 3, 2, 4))   # (kh, wi, ci, wo, co)
    return banded.reshape(kh, width * cin, width * cout)


def basic_block_pallas(x_nhwc, w1_hwio, w2_hwio, scale1, shift1, scale2, shift2):
    B, H, W, C = x_nhwc.shape
    cout = w1_hwio.shape[-1]
    assert cout == C, "residual path requires inplanes == planes (downsample=None)"
    # TODO(synk): stride != 1 and the optional `downsample` branch of BasicBlock are
    # not implemented (the module's default configuration is stride=1, downsample=None).

    wc = W * C
    bb = max(1, 128 // wc)                # images folded into the lane axis
    bb = min(bb, B)
    assert B % bb == 0, "batch must be divisible by the lane-fold factor"
    L = bb * wc                           # lane width per grid step (>= 128 here)

    # ---- layout plumbing (constants / reshapes / transposes only; no compute) ----
    x_rows = jnp.transpose(x_nhwc, (1, 0, 2, 3)).reshape(H, B * wc).astype(jnp.float32)

    def banded_big(w):
        band = _conv_weights_to_banded(w.astype(jnp.float32), W)        # (3, wc, wc)
        big = jnp.einsum('ab,kij->kaibj', jnp.eye(bb, dtype=jnp.float32), band)
        return big.reshape(3, L, L).astype(jnp.bfloat16)                # block-diag

    w1_big = banded_big(w1_hwio)
    w2_big = banded_big(w2_hwio)

    shifts = jnp.stack([jnp.eye(H, k=-1, dtype=jnp.float32),   # (S @ y)[h] = y[h-1]
                        jnp.eye(H, k=+1, dtype=jnp.float32)])  # (S @ y)[h] = y[h+1]
    bn = jnp.stack([jnp.tile(scale1, bb * W), jnp.tile(shift1, bb * W),
                    jnp.tile(scale2, bb * W), jnp.tile(shift2, bb * W)]
                   ).astype(jnp.float32)

    out_rows = pl.pallas_call(
        basic_block_kernel,
        out_shape=jax.ShapeDtypeStruct((H, B * wc), jnp.float32),
        grid=(B // bb,),
        in_specs=[
            pl.BlockSpec((H, L), lambda g: (0, g)),
            pl.BlockSpec((3, L, L), lambda g: (0, 0, 0)),
            pl.BlockSpec((3, L, L), lambda g: (0, 0, 0)),
            pl.BlockSpec((2, H, H), lambda g: (0, 0, 0)),
            pl.BlockSpec((4, L), lambda g: (0, 0)),
        ],
        out_specs=pl.BlockSpec((H, L), lambda g: (0, g)),
        compiler_params=pltpu.CompilerParams(
            dimension_semantics=("parallel",)),
    )(x_rows, w1_big, w2_big, shifts, bn)

    return jnp.transpose(out_rows.reshape(H, B, W, cout), (1, 0, 2, 3))


def basic_block_ref(x_nhwc, w1_hwio, w2_hwio, scale1, shift1, scale2, shift2):
    """Pure-JAX f32 reference (matches PyTorch eval-mode BasicBlock)."""
    dn = ("NHWC", "HWIO", "NHWC")
    out = jax.lax.conv_general_dilated(x_nhwc, w1_hwio, (1, 1), "SAME",
                                       dimension_numbers=dn)
    out = jnp.maximum(out * scale1 + shift1, 0.0)
    out = jax.lax.conv_general_dilated(out, w2_hwio, (1, 1), "SAME",
                                       dimension_numbers=dn)
    out = out * scale2 + shift2
    return jnp.maximum(out + x_nhwc, 0.0)


if __name__ == "__main__":
    key = jax.random.PRNGKey(0)
    B, C, H, W = 2, 4, 16, 16          # inplanes = planes = 4, stride = 1
    eps = 1e-5

    k = jax.random.split(key, 10)
    # PyTorch-layout input (NCHW) and weights (OIHW), generated in-script.
    x_nchw = jax.random.normal(k[0], (B, C, H, W), dtype=jnp.float32)
    w1_oihw = jax.random.normal(k[1], (C, C, 3, 3), dtype=jnp.float32) * 0.1
    w2_oihw = jax.random.normal(k[2], (C, C, 3, 3), dtype=jnp.float32) * 0.1

    gamma1 = 1.0 + 0.1 * jax.random.normal(k[3], (C,), dtype=jnp.float32)
    beta1 = 0.1 * jax.random.normal(k[4], (C,), dtype=jnp.float32)
    mean1 = 0.1 * jax.random.normal(k[5], (C,), dtype=jnp.float32)
    var1 = jax.random.uniform(k[6], (C,), minval=0.5, maxval=1.5)

    gamma2 = 1.0 + 0.1 * jax.random.normal(k[7], (C,), dtype=jnp.float32)
    beta2 = 0.1 * jax.random.normal(k[8], (C,), dtype=jnp.float32)
    mean2 = 0.1 * jax.random.normal(k[9], (C,), dtype=jnp.float32)
    var2 = jnp.ones((C,), dtype=jnp.float32)

    # Fold BN (inference form) into per-channel scale/shift.
    scale1 = gamma1 / jnp.sqrt(var1 + eps)
    shift1 = beta1 - mean1 * scale1
    scale2 = gamma2 / jnp.sqrt(var2 + eps)
    shift2 = beta2 - mean2 * scale2

    # Layout conversion (glue): NCHW -> NHWC, OIHW -> HWIO.
    x_nhwc = jnp.transpose(x_nchw, (0, 2, 3, 1))
    w1_hwio = jnp.transpose(w1_oihw, (2, 3, 1, 0))
    w2_hwio = jnp.transpose(w2_oihw, (2, 3, 1, 0))

    out = basic_block_pallas(x_nhwc, w1_hwio, w2_hwio,
                             scale1, shift1, scale2, shift2)
    out = jax.block_until_ready(out)

    ref = basic_block_ref(x_nhwc, w1_hwio, w2_hwio,
                          scale1, shift1, scale2, shift2)
    assert out.shape == (B, H, W, C)
    # bf16 matmul operands vs f32 reference -> loosen tolerance accordingly.
    assert jnp.allclose(out, ref, rtol=3e-2, atol=3e-2), \
        f"max abs err {jnp.max(jnp.abs(out - ref))}"

    print("KERNEL_OK")
</pallas_src>

<mosaic_0001>
module attributes {stable_mosaic.version = 11 : i64} {
  func.func @basic_block_kernel(%arg0: i32, %arg1: memref<16x128xf32, #tpu.memory_space<vmem>>, %arg2: memref<3x128x128xbf16, #tpu.memory_space<vmem>>, %arg3: memref<3x128x128xbf16, #tpu.memory_space<vmem>>, %arg4: memref<2x16x16xf32, #tpu.memory_space<vmem>>, %arg5: memref<4x128xf32, #tpu.memory_space<vmem>>, %arg6: memref<16x128xf32, #tpu.memory_space<vmem>>) attributes {dimension_semantics = [#tpu.dimension_semantics<parallel>], iteration_bounds = array<i64: 1>, scalar_prefetch = 0 : i64, scratch_operands = 0 : i64, tpu.core_type = #tpu.core_type<tc>, window_params = [{transform_indices = @transform_0, window_bounds = array<i64: 16, 128>}, {pipeline_mode = #tpu.pipeline_mode<synchronous>, transform_indices = @transform_1, window_bounds = array<i64: 3, 128, 128>}, {pipeline_mode = #tpu.pipeline_mode<synchronous>, transform_indices = @transform_2, window_bounds = array<i64: 3, 128, 128>}, {pipeline_mode = #tpu.pipeline_mode<synchronous>, transform_indices = @transform_3, window_bounds = array<i64: 2, 16, 16>}, {pipeline_mode = #tpu.pipeline_mode<synchronous>, transform_indices = @transform_4, window_bounds = array<i64: 4, 128>}, {transform_indices = @transform_5, window_bounds = array<i64: 16, 128>}]} {
    %c0 = arith.constant 0 : index
    %c0_0 = arith.constant 0 : index
    %0 = vector.load %arg1[%c0, %c0_0] : memref<16x128xf32, #tpu.memory_space<vmem>>, vector<16x128xf32>
    %1 = arith.truncf %0 : vector<16x128xf32> to vector<16x128xbf16>
    %c0_1 = arith.constant 0 : index
    %c0_2 = arith.constant 0 : index
    %2 = vector.load %arg5[%c0_1, %c0_2] : memref<4x128xf32, #tpu.memory_space<vmem>>, vector<4x128xf32>
    %c0_3 = arith.constant 0 : index
    %c0_4 = arith.constant 0 : index
    %c0_5 = arith.constant 0 : index
    %3 = vector.load %arg4[%c0_3, %c0_4, %c0_5] : memref<2x16x16xf32, #tpu.memory_space<vmem>>, vector<1x16x16xf32>
    %4 = vector.shape_cast %3 : vector<1x16x16xf32> to vector<16x16xf32>
    %c1 = arith.constant 1 : index
    %c0_6 = arith.constant 0 : index
    %c0_7 = arith.constant 0 : index
    %5 = vector.load %arg4[%c1, %c0_6, %c0_7] : memref<2x16x16xf32, #tpu.memory_space<vmem>>, vector<1x16x16xf32>
    %6 = vector.shape_cast %5 : vector<1x16x16xf32> to vector<16x16xf32>
    %c0_8 = arith.constant 0 : index
    %c0_9 = arith.constant 0 : index
    %c0_10 = arith.constant 0 : index
    %7 = vector.load %arg2[%c0_8, %c0_9, %c0_10] : memref<3x128x128xbf16, #tpu.memory_space<vmem>>, vector<1x128x128xbf16>
    %8 = vector.shape_cast %7 : vector<1x128x128xbf16> to vector<128x128xbf16>
    %cst = arith.constant dense<0.000000e+00> : vector<16x128xf32>
    %9 = tpu.matmul %1, %8, %cst {dimension_numbers = #tpu.dot_dimension_numbers<[1], [0], [0], [1], [0, 0, 1, 1], [], []>} : vector<16x128xbf16>, vector<128x128xbf16>, vector<16x128xf32> -> vector<16x128xf32>
    %c1_11 = arith.constant 1 : index
    %c0_12 = arith.constant 0 : index
    %c0_13 = arith.constant 0 : index
    %10 = vector.load %arg2[%c1_11, %c0_12, %c0_13] : memref<3x128x128xbf16, #tpu.memory_space<vmem>>, vector<1x128x128xbf16>
    %11 = vector.shape_cast %10 : vector<1x128x128xbf16> to vector<128x128xbf16>
    %cst_14 = arith.constant dense<0.000000e+00> : vector<16x128xf32>
    %12 = tpu.matmul %1, %11, %cst_14 {dimension_numbers = #tpu.dot_dimension_numbers<[1], [0], [0], [1], [0, 0, 1, 1], [], []>} : vector<16x128xbf16>, vector<128x128xbf16>, vector<16x128xf32> -> vector<16x128xf32>
    %c2 = arith.constant 2 : index
    %c0_15 = arith.constant 0 : index
    %c0_16 = arith.constant 0 : index
    %13 = vector.load %arg2[%c2, %c0_15, %c0_16] : memref<3x128x128xbf16, #tpu.memory_space<vmem>>, vector<1x128x128xbf16>
    %14 = vector.shape_cast %13 : vector<1x128x128xbf16> to vector<128x128xbf16>
    %cst_17 = arith.constant dense<0.000000e+00> : vector<16x128xf32>
    %15 = tpu.matmul %1, %14, %cst_17 {dimension_numbers = #tpu.dot_dimension_numbers<[1], [0], [0], [1], [0, 0, 1, 1], [], []>} : vector<16x128xbf16>, vector<128x128xbf16>, vector<16x128xf32> -> vector<16x128xf32>
    %cst_18 = arith.constant dense<0.000000e+00> : vector<16x128xf32>
    %16 = tpu.matmul %4, %9, %cst_18 {dimension_numbers = #tpu.dot_dimension_numbers<[1], [0], [0], [1], [0, 0, 1, 1], [], []>} : vector<16x16xf32>, vector<16x128xf32>, vector<16x128xf32> -> vector<16x128xf32>
    %17 = arith.addf %12, %16 : vector<16x128xf32>
    %cst_19 = arith.constant dense<0.000000e+00> : vector<16x128xf32>
    %18 = tpu.matmul %6, %15, %cst_19 {dimension_numbers = #tpu.dot_dimension_numbers<[1], [0], [0], [1], [0, 0, 1, 1], [], []>} : vector<16x16xf32>, vector<16x128xf32>, vector<16x128xf32> -> vector<16x128xf32>
    %19 = arith.addf %17, %18 : vector<16x128xf32>
    %20 = vector.extract_strided_slice %2 {offsets = [0, 0], sizes = [1, 128], strides = [1, 1]} : vector<4x128xf32> to vector<1x128xf32>
    %21 = vector.broadcast %20 : vector<1x128xf32> to vector<16x128xf32>
    %22 = arith.mulf %19, %21 : vector<16x128xf32>
    %23 = vector.extract_strided_slice %2 {offsets = [1, 0], sizes = [1, 128], strides = [1, 1]} : vector<4x128xf32> to vector<1x128xf32>
    %24 = vector.broadcast %23 : vector<1x128xf32> to vector<16x128xf32>
    %25 = arith.addf %22, %24 : vector<16x128xf32>
    %cst_20 = arith.constant 0.000000e+00 : f32
    %26 = vector.broadcast %cst_20 : f32 to vector<16x128xf32>
    %27 = arith.maximumf %25, %26 : vector<16x128xf32>
    %28 = arith.truncf %27 : vector<16x128xf32> to vector<16x128xbf16>
    %c0_21 = arith.constant 0 : index
    %c0_22 = arith.constant 0 : index
    %c0_23 = arith.constant 0 : index
    %29 = vector.load %arg3[%c0_21, %c0_22, %c0_23] : memref<3x128x128xbf16, #tpu.memory_space<vmem>>, vector<1x128x128xbf16>
    %30 = vector.shape_cast %29 : vector<1x128x128xbf16> to vector<128x128xbf16>
    %cst_24 = arith.constant dense<0.000000e+00> : vector<16x128xf32>
    %31 = tpu.matmul %28, %30, %cst_24 {dimension_numbers = #tpu.dot_dimension_numbers<[1], [0], [0], [1], [0, 0, 1, 1], [], []>} : vector<16x128xbf16>, vector<128x128xbf16>, vector<16x128xf32> -> vector<16x128xf32>
    %c1_25 = arith.constant 1 : index
    %c0_26 = arith.constant 0 : index
    %c0_27 = arith.constant 0 : index
    %32 = vector.load %arg3[%c1_25, %c0_26, %c0_27] : memref<3x128x128xbf16, #tpu.memory_space<vmem>>, vector<1x128x128xbf16>
    %33 = vector.shape_cast %32 : vector<1x128x128xbf16> to vector<128x128xbf16>
    %cst_28 = arith.constant dense<0.000000e+00> : vector<16x128xf32>
    %34 = tpu.matmul %28, %33, %cst_28 {dimension_numbers = #tpu.dot_dimension_numbers<[1], [0], [0], [1], [0, 0, 1, 1], [], []>} : vector<16x128xbf16>, vector<128x128xbf16>, vector<16x128xf32> -> vector<16x128xf32>
    %c2_29 = arith.constant 2 : index
    %c0_30 = arith.constant 0 : index
    %c0_31 = arith.constant 0 : index
    %35 = vector.load %arg3[%c2_29, %c0_30, %c0_31] : memref<3x128x128xbf16, #tpu.memory_space<vmem>>, vector<1x128x128xbf16>
    %36 = vector.shape_cast %35 : vector<1x128x128xbf16> to vector<128x128xbf16>
    %cst_32 = arith.constant dense<0.000000e+00> : vector<16x128xf32>
    %37 = tpu.matmul %28, %36, %cst_32 {dimension_numbers = #tpu.dot_dimension_numbers<[1], [0], [0], [1], [0, 0, 1, 1], [], []>} : vector<16x128xbf16>, vector<128x128xbf16>, vector<16x128xf32> -> vector<16x128xf32>
    %cst_33 = arith.constant dense<0.000000e+00> : vector<16x128xf32>
    %38 = tpu.matmul %4, %31, %cst_33 {dimension_numbers = #tpu.dot_dimension_numbers<[1], [0], [0], [1], [0, 0, 1, 1], [], []>} : vector<16x16xf32>, vector<16x128xf32>, vector<16x128xf32> -> vector<16x128xf32>
    %39 = arith.addf %34, %38 : vector<16x128xf32>
    %cst_34 = arith.constant dense<0.000000e+00> : vector<16x128xf32>
    %40 = tpu.matmul %6, %37, %cst_34 {dimension_numbers = #tpu.dot_dimension_numbers<[1], [0], [0], [1], [0, 0, 1, 1], [], []>} : vector<16x16xf32>, vector<16x128xf32>, vector<16x128xf32> -> vector<16x128xf32>
    %41 = arith.addf %39, %40 : vector<16x128xf32>
    %42 = vector.extract_strided_slice %2 {offsets = [2, 0], sizes = [1, 128], strides = [1, 1]} : vector<4x128xf32> to vector<1x128xf32>
    %43 = vector.broadcast %42 : vector<1x128xf32> to vector<16x128xf32>
    %44 = arith.mulf %41, %43 : vector<16x128xf32>
    %45 = vector.extract_strided_slice %2 {offsets = [3, 0], sizes = [1, 128], strides = [1, 1]} : vector<4x128xf32> to vector<1x128xf32>
    %46 = vector.broadcast %45 : vector<1x128xf32> to vector<16x128xf32>
    %47 = arith.addf %44, %46 : vector<16x128xf32>
    %48 = arith.addf %47, %0 : vector<16x128xf32>
    %cst_35 = arith.constant 0.000000e+00 : f32
    %49 = vector.broadcast %cst_35 : f32 to vector<16x128xf32>
    %50 = arith.maximumf %48, %49 : vector<16x128xf32>
    %c0_36 = arith.constant 0 : index
    %c0_37 = arith.constant 0 : index
    %51 = vector.load %arg6[%c0_36, %c0_37] : memref<16x128xf32, #tpu.memory_space<vmem>>, vector<16x128xf32>
    tpu.vector_store %arg6[%c0_36, %c0_37], %50 {strides = array<i32>} : memref<16x128xf32, #tpu.memory_space<vmem>>, vector<16x128xf32>,
    return
  }
  func.func @transform_0(%arg0: i32) -> (i32, i32) {
    %c0_i32 = arith.constant 0 : i32
    %c0_i32_0 = arith.constant 0 : i32
    return %c0_i32, %arg0 : i32, i32
  }
  func.func @transform_1(%arg0: i32) -> (i32, i32, i32) {
    %c0_i32 = arith.constant 0 : i32
    %c0_i32_0 = arith.constant 0 : i32
    %c0_i32_1 = arith.constant 0 : i32
    %c0_i32_2 = arith.constant 0 : i32
    return %c0_i32, %c0_i32_0, %c0_i32_1 : i32, i32, i32
  }
  func.func @transform_2(%arg0: i32) -> (i32, i32, i32) {
    %c0_i32 = arith.constant 0 : i32
    %c0_i32_0 = arith.constant 0 : i32
    %c0_i32_1 = arith.constant 0 : i32
    %c0_i32_2 = arith.constant 0 : i32
    return %c0_i32, %c0_i32_0, %c0_i32_1 : i32, i32, i32
  }
  func.func @transform_3(%arg0: i32) -> (i32, i32, i32) {
    %c0_i32 = arith.constant 0 : i32
    %c0_i32_0 = arith.constant 0 : i32
    %c0_i32_1 = arith.constant 0 : i32
    %c0_i32_2 = arith.constant 0 : i32
    return %c0_i32, %c0_i32_0, %c0_i32_1 : i32, i32, i32
  }
  func.func @transform_4(%arg0: i32) -> (i32, i32) {
    %c0_i32 = arith.constant 0 : i32
    %c0_i32_0 = arith.constant 0 : i32
    %c0_i32_1 = arith.constant 0 : i32
    return %c0_i32, %c0_i32_0 : i32, i32
  }
  func.func @transform_5(%arg0: i32) -> (i32, i32) {
    %c0_i32 = arith.constant 0 : i32
    %c0_i32_0 = arith.constant 0 : i32
    return %c0_i32, %arg0 : i32, i32
  }
}

</mosaic_0001>

<llo_original>
// kernel: tpu_custom_call.1
$region0: #{tpu_custom_call.1}
  #allocation0 [shape = 'u32[]', space=smem, size = 0x4, offset = 0x4, fixed_abs, tag = 'smem constant byte address 0x4 - core index']
  #allocation1 [shape = 'u32[72,128]{1,0:T(1,128)}', space=vmem, size = 0x9000, scoped, tag = 'internal scratch']
  %s0 = inlined_call_operand.hbm [shape: f32[16,128], index: 0, kind: input, shape index: {}]
  %s1 = inlined_call_operand.hbm [shape: bf16[3,128,128], index: 1, kind: input, shape index: {}]
  %s2 = inlined_call_operand.hbm [shape: bf16[3,128,128], index: 2, kind: input, shape index: {}]
  %s3 = inlined_call_operand.hbm [shape: f32[2,16,16], index: 3, kind: input, shape index: {}]
  %s4 = inlined_call_operand.hbm [shape: f32[4,128], index: 4, kind: input, shape index: {}]
  %s5 = inlined_call_operand.hbm [shape: f32[16,128], index: 5, kind: output, shape index: {}]
  %s6 = sld [smem:[#allocation0]]
  $region50: #{tpu_custom_call.1} parent=0
    _
  %s8 = ssub.s32 1, %s6
  %s9 = scalar_select 0, %s8, %s6
  $region1: #{tpu_custom_call.1} parent=0
    #allocation2 [shape = 'u8[8192]{0}', space=vmem, size = 0x2000, scoped, tag = 'input window, operand 0, single buffered']
    #allocation3 [shape = 's32[1]{0}', space=sflag, size = 0x4, scoped, tag = 'scoped memory for tpu_custom_call.1']
    #allocation4 [shape = 's32[1]{0}', space=sflag, size = 0x4, scoped, tag = 'scoped memory for tpu_custom_call.1']
    #allocation5 [shape = 'u8[98304]{0}', space=vmem, size = 0x18000, scoped, tag = 'input window, operand 1, single buffered']
    #allocation6 [shape = 's32[1]{0}', space=sflag, size = 0x4, scoped, tag = 'scoped memory for tpu_custom_call.1']
    #allocation7 [shape = 'u8[98304]{0}', space=vmem, size = 0x18000, scoped, tag = 'input window, operand 2, single buffered']
    #allocation8 [shape = 'u8[16384]{0}', space=vmem, size = 0x4000, scoped, tag = 'input window, operand 3, single buffered']
    #allocation9 [shape = 's32[1]{0}', space=sflag, size = 0x4, scoped, tag = 'scoped memory for tpu_custom_call.1']
    #allocation10 [shape = 'u8[2048]{0}', space=vmem, size = 0x800, scoped, tag = 'input window, operand 4, single buffered']
    #allocation11 [shape = 'u8[8192]{0}', space=vmem, size = 0x2000, scoped, tag = 'output window, operand 0, single buffered']
    %10 = vsyncpa [#allocation3], 0
    %11 = vsyncpa [#allocation6], 0
    %12 = vsyncpa [#allocation9], 0
    %13 = vsyncpa [#allocation4], 0
    // Predicated region
    $region2: #{tpu_custom_call.1} parent=1 // pred_check
      _
    $region3: #{tpu_custom_call.1} parent=1 // pred_check_branch
      %15 = sbr.rel (0) target = $region5
    $region4: #{tpu_custom_call.1} parent=1 // pred_region
      %17 = vsyncadd [#allocation3], 0
      %s18 = sshll.u32 %s0, 4
      %s19 = int_to_ptr.hbm [resolvable:$true] %s18
      %s20 = sshll.u32 [#allocation2], 4
      %s21 = int_to_ptr.vmem [resolvable:$true] %s20
      %26 = dma.hbm_to_vmem [thread:$0]  %s19, 256, %s21, [#allocation3], 128, 128, 8
    $region5: #{tpu_custom_call.1} parent=1 // pred_fallthru
      _
    // Predicated region
    $region6: #{tpu_custom_call.1} parent=1 // pred_check
      _
    $region7: #{tpu_custom_call.1} parent=1 // pred_check_branch
      %28 = sbr.rel (0) target = $region9
    $region8: #{tpu_custom_call.1} parent=1 // pred_region
      %30 = vsyncadd [#allocation6], 0
      %s31 = sshll.u32 %s1, 4
      %s32 = int_to_ptr.hbm [resolvable:$true] %s31
      %s33 = sshll.u32 [#allocation5], 4
      %s34 = int_to_ptr.vmem [resolvable:$true] %s33
      %39 = dma.hbm_to_vmem [thread:$0]  %s32, 3072, %s34, [#allocation6], 64, 64, 4
    $region9: #{tpu_custom_call.1} parent=1 // pred_fallthru
      _
    // Predicated region
    $region10: #{tpu_custom_call.1} parent=1 // pred_check
      _
    $region11: #{tpu_custom_call.1} parent=1 // pred_check_branch
      %41 = sbr.rel (0) target = $region13
    $region12: #{tpu_custom_call.1} parent=1 // pred_region
      %43 = vsyncadd [#allocation6], 0
      %s44 = sshll.u32 %s2, 4
      %s45 = int_to_ptr.hbm [resolvable:$true] %s44
      %s46 = sshll.u32 [#allocation7], 4
      %s47 = int_to_ptr.vmem [resolvable:$true] %s46
      %52 = dma.hbm_to_vmem [thread:$0]  %s45, 3072, %s47, [#allocation6], 64, 64, 4
    $region13: #{tpu_custom_call.1} parent=1 // pred_fallthru
      _
    // Predicated region
    $region14: #{tpu_custom_call.1} parent=1 // pred_check
      _
    $region15: #{tpu_custom_call.1} parent=1 // pred_check_branch
      %54 = sbr.rel (0) target = $region17
    $region16: #{tpu_custom_call.1} parent=1 // pred_region
      %56 = vsyncadd [#allocation9], 0
      %s57 = sshll.u32 %s3, 4
      %s58 = int_to_ptr.hbm [resolvable:$true] %s57
      %s59 = sshll.u32 [#allocation8], 4
      %s60 = int_to_ptr.vmem [resolvable:$true] %s59
      %65 = dma.hbm_to_vmem [thread:$0]  %s58, 512, %s60, [#allocation9], 128, 128, 8
    $region17: #{tpu_custom_call.1} parent=1 // pred_fallthru
      _
    // Predicated region
    $region18: #{tpu_custom_call.1} parent=1 // pred_check
      _
    $region19: #{tpu_custom_call.1} parent=1 // pred_check_branch
      %67 = sbr.rel (0) target = $region21
    $region20: #{tpu_custom_call.1} parent=1 // pred_region
      %69 = vsyncadd [#allocation9], 0
      %s71 = sshll.u32 %s4, 4
      %s72 = int_to_ptr.hbm [resolvable:$true] %s71
      %s73 = sshll.u32 [#allocation10], 4
      %s74 = int_to_ptr.vmem [resolvable:$true] %s73
      %76 = dma.hbm_to_vmem [thread:$0]  %s72, 64, %s74, [#allocation9]
    $region21: #{tpu_custom_call.1} parent=1 // pred_fallthru
      _
    // Predicated region
    $region22: #{tpu_custom_call.1} parent=1 // pred_check
      _
    $region23: #{tpu_custom_call.1} parent=1 // pred_check_branch
      %78 = sbr.rel (0) target = $region25
    $region24: #{tpu_custom_call.1} parent=1 // pred_region
      %80 = dma.done [#allocation3], 256
    $region25: #{tpu_custom_call.1} parent=1 // pred_fallthru
      _
    // Predicated region
    $region26: #{tpu_custom_call.1} parent=1 // pred_check
      _
    $region27: #{tpu_custom_call.1} parent=1 // pred_check_branch
      %82 = sbr.rel (0) target = $region29
    $region28: #{tpu_custom_call.1} parent=1 // pred_region
      %84 = dma.done [#allocation6], 3072
    $region29: #{tpu_custom_call.1} parent=1 // pred_fallthru
      _
    // Predicated region
    $region30: #{tpu_custom_call.1} parent=1 // pred_check
      _
    $region31: #{tpu_custom_call.1} parent=1 // pred_check_branch
      %86 = sbr.rel (0) target = $region33
    $region32: #{tpu_custom_call.1} parent=1 // pred_region
      %88 = dma.done [#allocation6], 3072
    $region33: #{tpu_custom_call.1} parent=1 // pred_fallthru
      _
    // Predicated region
    $region34: #{tpu_custom_call.1} parent=1 // pred_check
      _
    $region35: #{tpu_custom_call.1} parent=1 // pred_check_branch
      %90 = sbr.rel (0) target = $region37
    $region36: #{tpu_custom_call.1} parent=1 // pred_region
      %92 = dma.done [#allocation9], 512
    $region37: #{tpu_custom_call.1} parent=1 // pred_fallthru
      _
    // Predicated region
    $region38: #{tpu_custom_call.1} parent=1 // pred_check
      _
    $region39: #{tpu_custom_call.1} parent=1 // pred_check_branch
      %94 = sbr.rel (0) target = $region41
    $region40: #{tpu_custom_call.1} parent=1 // pred_region
      %96 = dma.done [#allocation9], 64
    $region41: #{tpu_custom_call.1} parent=1 // pred_fallthru
      _
    %v97 = vld [vmem:[#allocation2] sm:$0xff]
    %v98 = vld [vmem:[#allocation2 + $0x8] sm:$0xff]
    %v99 = vpack.c.bf16 %v98, %v97
    %v100 = vld [vmem:[#allocation10] sm:$0xf]
    %v101 = vld [vmem:[#allocation8] sm:$0xff]
    %v102 = vld [vmem:[#allocation8 + $0x8] sm:$0xff]
    %s103 = scalar_lea.vmem [#allocation8], 16
    %v104 = vld [vmem:[%s103] sm:$0xff]
    %v105 = vld [vmem:[%s103 + $0x8] sm:$0xff]
    %v106 = vld [vmem:[#allocation5] sm:$0xf]
    %v107 = vld [vmem:[#allocation5 + $0x4] sm:$0xf]
    %v108 = vld [vmem:[#allocation5 + $0x8] sm:$0xf]
    %v109 = vld [vmem:[#allocation5 + $0xc] sm:$0xf]
    %v110 = vld [vmem:[#allocation5 + $0x10] sm:$0xf]
    %v111 = vld [vmem:[#allocation5 + $0x14] sm:$0xf]
    %v112 = vld [vmem:[#allocation5 + $0x18] sm:$0xf]
    %v113 = vld [vmem:[#allocation5 + $0x1c] sm:$0xf]
    %v114 = vld [vmem:[#allocation5 + $0x20] sm:$0xf]
    %v115 = vld [vmem:[#allocation5 + $0x24] sm:$0xf]
    %v116 = vld [vmem:[#allocation5 + $0x28] sm:$0xf]
    %v117 = vld [vmem:[#allocation5 + $0x2c] sm:$0xf]
    %v118 = vld [vmem:[#allocation5 + $0x30] sm:$0xf]
    %v119 = vld [vmem:[#allocation5 + $0x34] sm:$0xf]
    %v120 = vld [vmem:[#allocation5 + $0x38] sm:$0xf]
    %v121 = vld [vmem:[#allocation5 + $0x3c] sm:$0xf]
    %v138 = vunpack.c.l.b16 %v106
    %v139 = vunpack.c.l.b16 %v107
    %v140 = vunpack.c.l.b16 %v108
    %v141 = vunpack.c.l.b16 %v109
    %v142 = vunpack.c.l.b16 %v110
    %v143 = vunpack.c.l.b16 %v111
    %v144 = vunpack.c.l.b16 %v112
    %v145 = vunpack.c.l.b16 %v113
    %v146 = vunpack.c.l.b16 %v114
    %v147 = vunpack.c.l.b16 %v115
    %v148 = vunpack.c.l.b16 %v116
    %v149 = vunpack.c.l.b16 %v117
    %v150 = vunpack.c.l.b16 %v118
    %v151 = vunpack.c.l.b16 %v119
    %v152 = vunpack.c.l.b16 %v120
    %v153 = vunpack.c.l.b16 %v121
    %v154 = vpack.c.b16 %v139, %v138
    %v155 = vpack.c.b16 %v141, %v140
    %v156 = vpack.c.b16 %v143, %v142
    %v157 = vpack.c.b16 %v145, %v144
    %v158 = vpack.c.b16 %v147, %v146
    %v159 = vpack.c.b16 %v149, %v148
    %v160 = vpack.c.b16 %v151, %v150
    %v161 = vpack.c.b16 %v153, %v152
    %170 = vmatpush.bf16.msra.mxu0 %v161
    %171 = vmatpush.bf16.msra.mxu0 %v160
    %172 = vmatpush.bf16.msra.mxu0 %v159
    %173 = vmatpush.bf16.msra.mxu0 %v158
    %174 = vmatpush.bf16.msra.mxu0 %v157
    %175 = vmatpush.bf16.msra.mxu0 %v156
    %176 = vmatpush.bf16.msra.mxu0 %v155
    %177 = vmatpush.bf16.msra.mxu0 %v154
    %178 = vmatmul.bf16.gmra.mxu0 %v99
    %v179 = vpop.f32.mrf.mxu0
    %v180 = vadd.f32 0.0, %v179
    %v181 = vpop.f32.mrf.mxu0
    %v182 = vadd.f32 0.0, %v181
    %183 = vdwg.mxu0
    %s184 = scalar_lea.vmem [#allocation5], 64
    %v185 = vld [vmem:[%s184] sm:$0xf]
    %v186 = vld [vmem:[%s184 + $0x4] sm:$0xf]
    %v187 = vld [vmem:[%s184 + $0x8] sm:$0xf]
    %v188 = vld [vmem:[%s184 + $0xc] sm:$0xf]
    %v189 = vld [vmem:[%s184 + $0x10] sm:$0xf]
    %v190 = vld [vmem:[%s184 + $0x14] sm:$0xf]
    %v191 = vld [vmem:[%s184 + $0x18] sm:$0xf]
    %v192 = vld [vmem:[%s184 + $0x1c] sm:$0xf]
    %v193 = vld [vmem:[%s184 + $0x20] sm:$0xf]
    %v194 = vld [vmem:[%s184 + $0x24] sm:$0xf]
    %v195 = vld [vmem:[%s184 + $0x28] sm:$0xf]
    %v196 = vld [vmem:[%s184 + $0x2c] sm:$0xf]
    %v197 = vld [vmem:[%s184 + $0x30] sm:$0xf]
    %v198 = vld [vmem:[%s184 + $0x34] sm:$0xf]
    %v199 = vld [vmem:[%s184 + $0x38] sm:$0xf]
    %v200 = vld [vmem:[%s184 + $0x3c] sm:$0xf]
    %s201 = scalar_lea.vmem [#allocation5], 128
    %v202 = vld [vmem:[%s201] sm:$0xf]
    %v203 = vld [vmem:[%s201 + $0x4] sm:$0xf]
    %v204 = vld [vmem:[%s201 + $0x8] sm:$0xf]
    %v205 = vld [vmem:[%s201 + $0xc] sm:$0xf]
    %v206 = vld [vmem:[%s201 + $0x10] sm:$0xf]
    %v207 = vld [vmem:[%s201 + $0x14] sm:$0xf]
    %v208 = vld [vmem:[%s201 + $0x18] sm:$0xf]
    %v209 = vld [vmem:[%s201 + $0x1c] sm:$0xf]
    %v210 = vld [vmem:[%s201 + $0x20] sm:$0xf]
    %v211 = vld [vmem:[%s201 + $0x24] sm:$0xf]
    %v212 = vld [vmem:[%s201 + $0x28] sm:$0xf]
    %v213 = vld [vmem:[%s201 + $0x2c] sm:$0xf]
    %v214 = vld [vmem:[%s201 + $0x30] sm:$0xf]
    %v215 = vld [vmem:[%s201 + $0x34] sm:$0xf]
    %v216 = vld [vmem:[%s201 + $0x38] sm:$0xf]
    %v217 = vld [vmem:[%s201 + $0x3c] sm:$0xf]
    %v234 = vunpack.c.l.b16 %v202
    %v235 = vunpack.c.l.b16 %v203
    %v236 = vunpack.c.l.b16 %v204
    %v237 = vunpack.c.l.b16 %v205
    %v238 = vunpack.c.l.b16 %v206
    %v239 = vunpack.c.l.b16 %v207
    %v240 = vunpack.c.l.b16 %v208
    %v241 = vunpack.c.l.b16 %v209
    %v242 = vunpack.c.l.b16 %v210
    %v243 = vunpack.c.l.b16 %v211
    %v244 = vunpack.c.l.b16 %v212
    %v245 = vunpack.c.l.b16 %v213
    %v246 = vunpack.c.l.b16 %v214
    %v247 = vunpack.c.l.b16 %v215
    %v248 = vunpack.c.l.b16 %v216
    %v249 = vunpack.c.l.b16 %v217
    %v250 = vpack.c.b16 %v235, %v234
    %v251 = vpack.c.b16 %v237, %v236
    %v252 = vpack.c.b16 %v239, %v238
    %v253 = vpack.c.b16 %v241, %v240
    %v254 = vpack.c.b16 %v243, %v242
    %v255 = vpack.c.b16 %v245, %v244
    %v256 = vpack.c.b16 %v247, %v246
    %v257 = vpack.c.b16 %v249, %v248
    %266 = vmatpush.bf16.msra.mxu0 %v257
    %267 = vmatpush.bf16.msra.mxu0 %v256
    %268 = vmatpush.bf16.msra.mxu0 %v255
    %269 = vmatpush.bf16.msra.mxu0 %v254
    %270 = vmatpush.bf16.msra.mxu0 %v253
    %271 = vmatpush.bf16.msra.mxu0 %v252
    %272 = vmatpush.bf16.msra.mxu0 %v251
    %273 = vmatpush.bf16.msra.mxu0 %v250
    %274 = vmatmul.bf16.gmra.mxu0 %v99
    %v275 = vpop.f32.mrf.mxu0
    %v276 = vadd.f32 0.0, %v275
    %v277 = vpop.f32.mrf.mxu0
    %v278 = vadd.f32 0.0, %v277
    %279 = vdwg.mxu0
    %vm280 = vcmask 130048
    %v282 = vsel %vm280, %v101, 0
    %v285 = vsel %vm280, %v102, 0
    %287 = vmatpush.msra.mxu0 0.0
    %288 = vmatpush.msra.mxu0 0.0
    %289 = vmatpush.msra.mxu0 0.0
    %290 = vmatpush.msra.mxu0 0.0
    %291 = vmatpush.msra.mxu0 0.0
    %292 = vmatpush.msra.mxu0 0.0
    %293 = vmatpush.msra.mxu0 0.0
    %294 = vmatpush.msra.mxu0 0.0
    %295 = vmatpush.msra.mxu0 0.0
    %296 = vmatpush.msra.mxu0 0.0
    %297 = vmatpush.msra.mxu0 0.0
    %298 = vmatpush.msra.mxu0 0.0
    %299 = vmatpush.msra.mxu0 0.0
    %300 = vmatpush.msra.mxu0 0.0
    %301 = vmatpush.msra.mxu0 %v182
    %302 = vmatpush.msra.mxu0 %v180
    %303 = vmatmul.f32.gmra.mxu0 %v282
    %v304 = vpop.f32.mrf.mxu0
    %v305 = vadd.f32 0.0, %v304
    %306 = vmatmul.f32.gmra.mxu0 %v285
    %v307 = vpop.f32.mrf.mxu0
    %v308 = vadd.f32 0.0, %v307
    %309 = vdwg.mxu0
    %v326 = vunpack.c.l.b16 %v185
    %v327 = vunpack.c.l.b16 %v186
    %v328 = vunpack.c.l.b16 %v187
    %v329 = vunpack.c.l.b16 %v188
    %v330 = vunpack.c.l.b16 %v189
    %v331 = vunpack.c.l.b16 %v190
    %v332 = vunpack.c.l.b16 %v191
    %v333 = vunpack.c.l.b16 %v192
    %v334 = vunpack.c.l.b16 %v193
    %v335 = vunpack.c.l.b16 %v194
    %v336 = vunpack.c.l.b16 %v195
    %v337 = vunpack.c.l.b16 %v196
    %v338 = vunpack.c.l.b16 %v197
    %v339 = vunpack.c.l.b16 %v198
    %v340 = vunpack.c.l.b16 %v199
    %v341 = vunpack.c.l.b16 %v200
    %v342 = vpack.c.b16 %v327, %v326
    %v343 = vpack.c.b16 %v329, %v328
    %v344 = vpack.c.b16 %v331, %v330
    %v345 = vpack.c.b16 %v333, %v332
    %v346 = vpack.c.b16 %v335, %v334
    %v347 = vpack.c.b16 %v337, %v336
    %v348 = vpack.c.b16 %v339, %v338
    %v349 = vpack.c.b16 %v341, %v340
    %358 = vmatpush.bf16.msra.mxu0 %v349
    %359 = vmatpush.bf16.msra.mxu0 %v348
    %360 = vmatpush.bf16.msra.mxu0 %v347
    %361 = vmatpush.bf16.msra.mxu0 %v346
    %362 = vmatpush.bf16.msra.mxu0 %v345
    %363 = vmatpush.bf16.msra.mxu0 %v344
    %364 = vmatpush.bf16.msra.mxu0 %v343
    %365 = vmatpush.bf16.msra.mxu0 %v342
    %366 = vmatmul.bf16.gmra.mxu0 %v99
    %v367 = vpop.f32.mrf.mxu0
    %v368 = vadd.f32 %v305, %v367
    %v369 = vpop.f32.mrf.mxu0
    %v370 = vadd.f32 %v308, %v369
    %371 = vdwg.mxu0
    %v373 = vsel %vm280, %v104, 0
    %v376 = vsel %vm280, %v105, 0
    %378 = vmatpush.msra.mxu0 0.0
    %379 = vmatpush.msra.mxu0 0.0
    %380 = vmatpush.msra.mxu0 0.0
    %381 = vmatpush.msra.mxu0 0.0
    %382 = vmatpush.msra.mxu0 0.0
    %383 = vmatpush.msra.mxu0 0.0
    %384 = vmatpush.msra.mxu0 0.0
    %385 = vmatpush.msra.mxu0 0.0
    %386 = vmatpush.msra.mxu0 0.0
    %387 = vmatpush.msra.mxu0 0.0
    %388 = vmatpush.msra.mxu0 0.0
    %389 = vmatpush.msra.mxu0 0.0
    %390 = vmatpush.msra.mxu0 0.0
    %391 = vmatpush.msra.mxu0 0.0
    %392 = vmatpush.msra.mxu0 %v278
    %393 = vmatpush.msra.mxu0 %v276
    %394 = vmatmul.f32.gmra.mxu0 %v373
    %v395 = vpop.f32.mrf.mxu0
    %v396 = vadd.f32 0.0, %v395
    %397 = vmatmul.f32.gmra.mxu0 %v376
    %v398 = vpop.f32.mrf.mxu0
    %v399 = vadd.f32 0.0, %v398
    %400 = vdwg.mxu0
    %v401 = vadd.f32 %v368, %v396
    %v402 = vadd.f32 %v370, %v399
    %v403 = vperm.slane %v100, 0
    %v404 = vmul.f32 %v401, %v403
    %v405 = vmul.f32 %v402, %v403
    %v406 = vperm.slane %v100, 1
    %v407 = vadd.f32 %v404, %v406
    %v408 = vadd.f32 %v405, %v406
    %v409 = vmax.f32 %v407, 0.0
    %v410 = vmax.f32 %v408, 0.0
    %v411 = vpack.c.bf16 %v410, %v409
    %v412 = vld [vmem:[#allocation7] sm:$0xf]
    %v413 = vld [vmem:[#allocation7 + $0x4] sm:$0xf]
    %v414 = vld [vmem:[#allocation7 + $0x8] sm:$0xf]
    %v415 = vld [vmem:[#allocation7 + $0xc] sm:$0xf]
    %v416 = vld [vmem:[#allocation7 + $0x10] sm:$0xf]
    %v417 = vld [vmem:[#allocation7 + $0x14] sm:$0xf]
    %v418 = vld [vmem:[#allocation7 + $0x18] sm:$0xf]
    %v419 = vld [vmem:[#allocation7 + $0x1c] sm:$0xf]
    %v420 = vld [vmem:[#allocation7 + $0x20] sm:$0xf]
    %v421 = vld [vmem:[#allocation7 + $0x24] sm:$0xf]
    %v422 = vld [vmem:[#allocation7 + $0x28] sm:$0xf]
    %v423 = vld [vmem:[#allocation7 + $0x2c] sm:$0xf]
    %v424 = vld [vmem:[#allocation7 + $0x30] sm:$0xf]
    %v425 = vld [vmem:[#allocation7 + $0x34] sm:$0xf]
    %v426 = vld [vmem:[#allocation7 + $0x38] sm:$0xf]
    %v427 = vld [vmem:[#allocation7 + $0x3c] sm:$0xf]
    %v444 = vunpack.c.l.b16 %v412
    %v445 = vunpack.c.l.b16 %v413
    %v446 = vunpack.c.l.b16 %v414
    %v447 = vunpack.c.l.b16 %v415
    %v448 = vunpack.c.l.b16 %v416
    %v449 = vunpack.c.l.b16 %v417
    %v450 = vunpack.c.l.b16 %v418
    %v451 = vunpack.c.l.b16 %v419
    %v452 = vunpack.c.l.b16 %v420
    %v453 = vunpack.c.l.b16 %v421
    %v454 = vunpack.c.l.b16 %v422
    %v455 = vunpack.c.l.b16 %v423
    %v456 = vunpack.c.l.b16 %v424
    %v457 = vunpack.c.l.b16 %v425
    %v458 = vunpack.c.l.b16 %v426
    %v459 = vunpack.c.l.b16 %v427
    %v460 = vpack.c.b16 %v445, %v444
    %v461 = vpack.c.b16 %v447, %v446
    %v462 = vpack.c.b16 %v449, %v448
    %v463 = vpack.c.b16 %v451, %v450
    %v464 = vpack.c.b16 %v453, %v452
    %v465 = vpack.c.b16 %v455, %v454
    %v466 = vpack.c.b16 %v457, %v456
    %v467 = vpack.c.b16 %v459, %v458
    %476 = vmatpush.bf16.msra.mxu0 %v467
    %477 = vmatpush.bf16.msra.mxu0 %v466
    %478 = vmatpush.bf16.msra.mxu0 %v465
    %479 = vmatpush.bf16.msra.mxu0 %v464
    %480 = vmatpush.bf16.msra.mxu0 %v463
    %481 = vmatpush.bf16.msra.mxu0 %v462
    %482 = vmatpush.bf16.msra.mxu0 %v461
    %483 = vmatpush.bf16.msra.mxu0 %v460
    %484 = vmatmul.bf16.gmra.mxu0 %v411
    %v485 = vpop.f32.mrf.mxu0
    %v486 = vadd.f32 0.0, %v485
    %v487 = vpop.f32.mrf.mxu0
    %v488 = vadd.f32 0.0, %v487
    %489 = vdwg.mxu0
    %s490 = scalar_lea.vmem [#allocation7], 64
    %v491 = vld [vmem:[%s490] sm:$0xf]
    %v492 = vld [vmem:[%s490 + $0x4] sm:$0xf]
    %v493 = vld [vmem:[%s490 + $0x8] sm:$0xf]
    %v494 = vld [vmem:[%s490 + $0xc] sm:$0xf]
    %v495 = vld [vmem:[%s490 + $0x10] sm:$0xf]
    %v496 = vld [vmem:[%s490 + $0x14] sm:$0xf]
    %v497 = vld [vmem:[%s490 + $0x18] sm:$0xf]
    %v498 = vld [vmem:[%s490 + $0x1c] sm:$0xf]
    %v499 = vld [vmem:[%s490 + $0x20] sm:$0xf]
    %v500 = vld [vmem:[%s490 + $0x24] sm:$0xf]
    %v501 = vld [vmem:[%s490 + $0x28] sm:$0xf]
    %v502 = vld [vmem:[%s490 + $0x2c] sm:$0xf]
    %v503 = vld [vmem:[%s490 + $0x30] sm:$0xf]
    %v504 = vld [vmem:[%s490 + $0x34] sm:$0xf]
    %v505 = vld [vmem:[%s490 + $0x38] sm:$0xf]
    %v506 = vld [vmem:[%s490 + $0x3c] sm:$0xf]
    %s507 = scalar_lea.vmem [#allocation7], 128
    %v508 = vld [vmem:[%s507] sm:$0xf]
    %v509 = vld [vmem:[%s507 + $0x4] sm:$0xf]
    %v510 = vld [vmem:[%s507 + $0x8] sm:$0xf]
    %v511 = vld [vmem:[%s507 + $0xc] sm:$0xf]
    %v512 = vld [vmem:[%s507 + $0x10] sm:$0xf]
    %v513 = vld [vmem:[%s507 + $0x14] sm:$0xf]
    %v514 = vld [vmem:[%s507 + $0x18] sm:$0xf]
    %v515 = vld [vmem:[%s507 + $0x1c] sm:$0xf]
    %v516 = vld [vmem:[%s507 + $0x20] sm:$0xf]
    %v517 = vld [vmem:[%s507 + $0x24] sm:$0xf]
    %v518 = vld [vmem:[%s507 + $0x28] sm:$0xf]
    %v519 = vld [vmem:[%s507 + $0x2c] sm:$0xf]
    %v520 = vld [vmem:[%s507 + $0x30] sm:$0xf]
    %v521 = vld [vmem:[%s507 + $0x34] sm:$0xf]
    %v522 = vld [vmem:[%s507 + $0x38] sm:$0xf]
    %v523 = vld [vmem:[%s507 + $0x3c] sm:$0xf]
    %v540 = vunpack.c.l.b16 %v508
    %v541 = vunpack.c.l.b16 %v509
    %v542 = vunpack.c.l.b16 %v510
    %v543 = vunpack.c.l.b16 %v511
    %v544 = vunpack.c.l.b16 %v512
    %v545 = vunpack.c.l.b16 %v513
    %v546 = vunpack.c.l.b16 %v514
    %v547 = vunpack.c.l.b16 %v515
    %v548 = vunpack.c.l.b16 %v516
    %v549 = vunpack.c.l.b16 %v517
    %v550 = vunpack.c.l.b16 %v518
    %v551 = vunpack.c.l.b16 %v519
    %v552 = vunpack.c.l.b16 %v520
    %v553 = vunpack.c.l.b16 %v521
    %v554 = vunpack.c.l.b16 %v522
    %v555 = vunpack.c.l.b16 %v523
    %v556 = vpack.c.b16 %v541, %v540
    %v557 = vpack.c.b16 %v543, %v542
    %v558 = vpack.c.b16 %v545, %v544
    %v559 = vpack.c.b16 %v547, %v546
    %v560 = vpack.c.b16 %v549, %v548
    %v561 = vpack.c.b16 %v551, %v550
    %v562 = vpack.c.b16 %v553, %v552
    %v563 = vpack.c.b16 %v555, %v554
    %572 = vmatpush.bf16.msra.mxu0 %v563
    %573 = vmatpush.bf16.msra.mxu0 %v562
    %574 = vmatpush.bf16.msra.mxu0 %v561
    %575 = vmatpush.bf16.msra.mxu0 %v560
    %576 = vmatpush.bf16.msra.mxu0 %v559
    %577 = vmatpush.bf16.msra.mxu0 %v558
    %578 = vmatpush.bf16.msra.mxu0 %v557
    %579 = vmatpush.bf16.msra.mxu0 %v556
    %580 = vmatmul.bf16.gmra.mxu0 %v411
    %v581 = vpop.f32.mrf.mxu0
    %v582 = vadd.f32 0.0, %v581
    %v583 = vpop.f32.mrf.mxu0
    %v584 = vadd.f32 0.0, %v583
    %585 = vdwg.mxu0
    %586 = vmatpush.msra.mxu0 0.0
    %587 = vmatpush.msra.mxu0 0.0
    %588 = vmatpush.msra.mxu0 0.0
    %589 = vmatpush.msra.mxu0 0.0
    %590 = vmatpush.msra.mxu0 0.0
    %591 = vmatpush.msra.mxu0 0.0
    %592 = vmatpush.msra.mxu0 0.0
    %593 = vmatpush.msra.mxu0 0.0
    %594 = vmatpush.msra.mxu0 0.0
    %595 = vmatpush.msra.mxu0 0.0
    %596 = vmatpush.msra.mxu0 0.0
    %597 = vmatpush.msra.mxu0 0.0
    %598 = vmatpush.msra.mxu0 0.0
    %599 = vmatpush.msra.mxu0 0.0
    %600 = vmatpush.msra.mxu0 %v488
    %601 = vmatpush.msra.mxu0 %v486
    %602 = vmatmul.f32.gmra.mxu0 %v282
    %v603 = vpop.f32.mrf.mxu0
    %v604 = vadd.f32 0.0, %v603
    %605 = vmatmul.f32.gmra.mxu0 %v285
    %v606 = vpop.f32.mrf.mxu0
    %v607 = vadd.f32 0.0, %v606
    %608 = vdwg.mxu0
    %v625 = vunpack.c.l.b16 %v491
    %v626 = vunpack.c.l.b16 %v492
    %v627 = vunpack.c.l.b16 %v493
    %v628 = vunpack.c.l.b16 %v494
    %v629 = vunpack.c.l.b16 %v495
    %v630 = vunpack.c.l.b16 %v496
    %v631 = vunpack.c.l.b16 %v497
    %v632 = vunpack.c.l.b16 %v498
    %v633 = vunpack.c.l.b16 %v499
    %v634 = vunpack.c.l.b16 %v500
    %v635 = vunpack.c.l.b16 %v501
    %v636 = vunpack.c.l.b16 %v502
    %v637 = vunpack.c.l.b16 %v503
    %v638 = vunpack.c.l.b16 %v504
    %v639 = vunpack.c.l.b16 %v505
    %v640 = vunpack.c.l.b16 %v506
    %v641 = vpack.c.b16 %v626, %v625
    %v642 = vpack.c.b16 %v628, %v627
    %v643 = vpack.c.b16 %v630, %v629
    %v644 = vpack.c.b16 %v632, %v631
    %v645 = vpack.c.b16 %v634, %v633
    %v646 = vpack.c.b16 %v636, %v635
    %v647 = vpack.c.b16 %v638, %v637
    %v648 = vpack.c.b16 %v640, %v639
    %657 = vmatpush.bf16.msra.mxu0 %v648
    %658 = vmatpush.bf16.msra.mxu0 %v647
    %659 = vmatpush.bf16.msra.mxu0 %v646
    %660 = vmatpush.bf16.msra.mxu0 %v645
    %661 = vmatpush.bf16.msra.mxu0 %v644
    %662 = vmatpush.bf16.msra.mxu0 %v643
    %663 = vmatpush.bf16.msra.mxu0 %v642
    %664 = vmatpush.bf16.msra.mxu0 %v641
    %665 = vmatmul.bf16.gmra.mxu0 %v411
    %v666 = vpop.f32.mrf.mxu0
    %v667 = vadd.f32 %v604, %v666
    %v668 = vpop.f32.mrf.mxu0
    %v669 = vadd.f32 %v607, %v668
    %670 = vdwg.mxu0
    %671 = vmatpush.msra.mxu0 0.0
    %672 = vmatpush.msra.mxu0 0.0
    %673 = vmatpush.msra.mxu0 0.0
    %674 = vmatpush.msra.mxu0 0.0
    %675 = vmatpush.msra.mxu0 0.0
    %676 = vmatpush.msra.mxu0 0.0
    %677 = vmatpush.msra.mxu0 0.0
    %678 = vmatpush.msra.mxu0 0.0
    %679 = vmatpush.msra.mxu0 0.0
    %680 = vmatpush.msra.mxu0 0.0
    %681 = vmatpush.msra.mxu0 0.0
    %682 = vmatpush.msra.mxu0 0.0
    %683 = vmatpush.msra.mxu0 0.0
    %684 = vmatpush.msra.mxu0 0.0
    %685 = vmatpush.msra.mxu0 %v584
    %686 = vmatpush.msra.mxu0 %v582
    %687 = vmatmul.f32.gmra.mxu0 %v373
    %v688 = vpop.f32.mrf.mxu0
    %v689 = vadd.f32 0.0, %v688
    %690 = vmatmul.f32.gmra.mxu0 %v376
    %v691 = vpop.f32.mrf.mxu0
    %v692 = vadd.f32 0.0, %v691
    %693 = vdwg.mxu0
    %v694 = vadd.f32 %v667, %v689
    %v695 = vadd.f32 %v669, %v692
    %v696 = vperm.slane %v100, 2
    %v697 = vmul.f32 %v694, %v696
    %v698 = vmul.f32 %v695, %v696
    %v699 = vperm.slane %v100, 3
    %v700 = vadd.f32 %v697, %v699
    %v701 = vadd.f32 %v698, %v699
    %v702 = vadd.f32 %v700, %v97
    %v703 = vadd.f32 %v701, %v98
    %v704 = vmax.f32 %v702, 0.0
    %v705 = vmax.f32 %v703, 0.0
    %706 = vst [vmem:[#allocation11] sm:$0xff] %v704
    %707 = vst [vmem:[#allocation11 + $0x8] sm:$0xff] %v705
    // Predicated region
    $region42: #{tpu_custom_call.1} parent=1 // pred_check
      _
    $region43: #{tpu_custom_call.1} parent=1 // pred_check_branch
      %709 = sbr.rel (0) target = $region45
    $region44: #{tpu_custom_call.1} parent=1 // pred_region
      %711 = vsyncadd [#allocation4], 0
      %s712 = sshll.u32 [#allocation11], 4
      %s713 = int_to_ptr.vmem [resolvable:$true] %s712
      %s714 = sshll.u32 %s5, 4
      %s715 = int_to_ptr.hbm [resolvable:$true] %s714
      %720 = dma.vmem_to_hbm [thread:$0]  %s713, 256, %s715, [#allocation4], 128, 128, 8
    $region45: #{tpu_custom_call.1} parent=1 // pred_fallthru
      _
    // Predicated region
    $region46: #{tpu_custom_call.1} parent=1 // pred_check
      _
    $region47: #{tpu_custom_call.1} parent=1 // pred_check_branch
      %722 = sbr.rel (0) target = $region49
    $region48: #{tpu_custom_call.1} parent=1 // pred_region
      %724 = dma.done [#allocation4], 256
    $region49: #{tpu_custom_call.1} parent=1 // pred_fallthru
      _
    %725 = vsyncpa [#allocation3], 1
    %726 = vsyncpa [#allocation6], 1
    %727 = vsyncpa [#allocation9], 1
    %728 = vsyncpa [#allocation4], 1

</llo_original>
